<compile_context>
chip_gen: v7x
topology: tpu7x:2x2x1
jax: 0.10.0
libtpu: 0.0.40
codegen_flags: <defaults>
</compile_context>

<pallas_src>
import functools
from math import gcd, ceil

import jax
import jax.numpy as jnp
from jax.experimental import pallas as pl
from jax.experimental.pallas import tpu as pltpu

_MASK_VALUE = -float(jnp.finfo(jnp.float32).max)


def _lcm(a, b):
    return a * b // gcd(a, b)


def _ceil_to(x, m):
    return int(ceil(x / m) * m)


def _row_tiles(m, max_tile=256):
    """Pick a row tile (multiple of 8 or == full) and padded row count."""
    if m <= max_tile:
        return m, m
    return max_tile, _ceil_to(m, max_tile)


def _col_tiles(n, max_tn=512):
    """Pick a column tile (multiple of 128 or == full) and padded col count."""
    if n <= max_tn:
        return n, n
    np_ = _ceil_to(n, 128)
    tn = min(max_tn, np_)
    while np_ % tn:
        tn -= 128
    return tn, np_


# ----------------------------------------------------------------------------
# Pallas kernel 1: dense (bf16 matmul + bias, optional exact GELU), N-tiled
# ----------------------------------------------------------------------------
def _dense_kernel(x_ref, w_ref, b_ref, o_ref, *, activation):
    acc = jnp.dot(x_ref[...], w_ref[...], preferred_element_type=jnp.float32)
    acc = acc + b_ref[...]
    if activation == "gelu":
        acc = 0.5 * acc * (1.0 + jax.lax.erf(acc * 0.7071067811865476))
    o_ref[...] = acc.astype(o_ref.dtype)


def dense(x, w, bias=None, activation="none", out_dtype=jnp.float32, max_tn=512):
    """x: (M, K), w: (K, N) (pre-transposed, bf16), bias: (N,) -> (M, N)."""
    M, K = x.shape
    Kw, N = w.shape
    assert K == Kw
    TMr, Mp = _row_tiles(M)
    TN, Np = _col_tiles(N, max_tn)

    xp = x.astype(jnp.bfloat16)
    if Mp != M:
        xp = jnp.pad(xp, ((0, Mp - M), (0, 0)))
    wp = w.astype(jnp.bfloat16)
    bp = (jnp.zeros((N,), jnp.float32) if bias is None else bias).astype(jnp.float32)
    if Np != N:
        wp = jnp.pad(wp, ((0, 0), (0, Np - N)))
        bp = jnp.pad(bp, (0, Np - N))
    bp = bp.reshape(1, Np)

    out = pl.pallas_call(
        functools.partial(_dense_kernel, activation=activation),
        out_shape=jax.ShapeDtypeStruct((Mp, Np), out_dtype),
        grid=(Np // TN, Mp // TMr),          # weight block resident across M tiles
        in_specs=[
            pl.BlockSpec((TMr, K), lambda j, i: (i, 0)),
            pl.BlockSpec((K, TN), lambda j, i: (0, j)),
            pl.BlockSpec((1, TN), lambda j, i: (0, j)),
        ],
        out_specs=pl.BlockSpec((TMr, TN), lambda j, i: (i, j)),
        compiler_params=pltpu.CompilerParams(
            dimension_semantics=("parallel", "parallel")),
    )(xp, wp, bp)
    if Mp != M or Np != N:
        out = out[:M, :N]
    return out


# ----------------------------------------------------------------------------
# Pallas kernel 2: row-wise LayerNorm (PreNorm)
# ----------------------------------------------------------------------------
def _layernorm_kernel(x_ref, g_ref, b_ref, o_ref, *, eps):
    x = x_ref[...]
    mean = jnp.mean(x, axis=-1, keepdims=True)
    var = jnp.mean(jnp.square(x - mean), axis=-1, keepdims=True)
    y = (x - mean) * jax.lax.rsqrt(var + eps)
    o_ref[...] = y * g_ref[...] + b_ref[...]


def layernorm(x, gamma, beta, eps=1e-5):
    M, D = x.shape
    TMr, Mp = _row_tiles(M)
    xp = x.astype(jnp.float32)
    if Mp != M:
        xp = jnp.pad(xp, ((0, Mp - M), (0, 0)))
    out = pl.pallas_call(
        functools.partial(_layernorm_kernel, eps=eps),
        out_shape=jax.ShapeDtypeStruct((Mp, D), jnp.float32),
        grid=(Mp // TMr,),
        in_specs=[
            pl.BlockSpec((TMr, D), lambda i: (i, 0)),
            pl.BlockSpec((1, D), lambda i: (0, 0)),
            pl.BlockSpec((1, D), lambda i: (0, 0)),
        ],
        out_specs=pl.BlockSpec((TMr, D), lambda i: (i, 0)),
        compiler_params=pltpu.CompilerParams(dimension_semantics=("parallel",)),
    )(xp, gamma.reshape(1, D).astype(jnp.float32),
      beta.reshape(1, D).astype(jnp.float32))
    return out if Mp == M else out[:M]


# ----------------------------------------------------------------------------
# Pallas kernel 3: fused "same" Conv1d (no HBM im2col): k shifted matmuls
# ----------------------------------------------------------------------------
def _conv1d_kernel(x_ref, halo_ref, w_ref, b_ref, o_ref, *, k, tm, cin, activation):
    window = jnp.concatenate([x_ref[0, 0], halo_ref[0, 0]], axis=0)   # (tm+k-1, cin)
    acc = None
    for dk in range(k):
        part = jnp.dot(window[dk:dk + tm, :],
                       w_ref[dk * cin:(dk + 1) * cin, :],
                       preferred_element_type=jnp.float32)
        acc = part if acc is None else acc + part
    acc = acc + b_ref[...]
    if activation == "gelu":
        acc = 0.5 * acc * (1.0 + jax.lax.erf(acc * 0.7071067811865476))
    o_ref[0] = acc.astype(o_ref.dtype)


def conv1d_same(x, w2d, bias, k, activation="none", out_dtype=jnp.float32, max_tn=512):
    """x: (B, L, Cin); w2d: (k*Cin, Cout), row = dk*Cin + ci; torch 'same' conv."""
    B, L, Cin = x.shape
    KC, Cout = w2d.shape
    assert KC == k * Cin
    assert k % 2 == 1, "only odd kernel sizes (torch 'same' residual path)"
    if k == 1:
        out = dense(x.reshape(B * L, Cin), w2d, bias, activation, out_dtype, max_tn)
        return out.reshape(B, L, Cout)

    pad = (k - 1) // 2
    kh = k - 1
    TMr = min(128, _ceil_to(L, 8))
    Lp = _ceil_to(L, TMr)
    Lt = Lp // TMr
    xpb = jnp.pad(x.astype(jnp.bfloat16), ((0, 0), (pad, pad + Lp - L), (0, 0)))
    xmain = xpb[:, :Lp, :].reshape(B, Lt, TMr, Cin)
    hidx = (jnp.arange(Lt)[:, None] + 1) * TMr + jnp.arange(kh)[None, :]
    halo = xpb[:, hidx, :]                                    # (B, Lt, kh, Cin)

    TN, Coutp = _col_tiles(Cout, max_tn)
    wp = w2d.astype(jnp.bfloat16)
    bp = bias.astype(jnp.float32)
    if Coutp != Cout:
        wp = jnp.pad(wp, ((0, 0), (0, Coutp - Cout)))
        bp = jnp.pad(bp, (0, Coutp - Cout))
    bp = bp.reshape(1, Coutp)

    out = pl.pallas_call(
        functools.partial(_conv1d_kernel, k=k, tm=TMr, cin=Cin, activation=activation),
        out_shape=jax.ShapeDtypeStruct((B, Lp, Coutp), out_dtype),
        grid=(B, Coutp // TN, Lt),           # weight resident across L tiles
        in_specs=[
            pl.BlockSpec((1, 1, TMr, Cin), lambda bi, j, li: (bi, li, 0, 0)),
            pl.BlockSpec((1, 1, kh, Cin), lambda bi, j, li: (bi, li, 0, 0)),
            pl.BlockSpec((KC, TN), lambda bi, j, li: (0, j)),
            pl.BlockSpec((1, TN), lambda bi, j, li: (0, j)),
        ],
        out_specs=pl.BlockSpec((1, TMr, TN), lambda bi, j, li: (bi, li, j)),
        compiler_params=pltpu.CompilerParams(
            dimension_semantics=("parallel", "parallel", "arbitrary")),
    )(xmain, halo, wp, bp)
    if Lp != L or Coutp != Cout:
        out = out[:, :L, :Cout]
    return out


# ----------------------------------------------------------------------------
# Pallas kernel 4: fused LongShortAttention core (all heads per (batch,window))
# ----------------------------------------------------------------------------
def _attn_kernel(q_ref, gkv_ref, lkv_ref, lkeep_ref, lg_ref, lb_ref, gg_ref, gb_ref,
                 o_ref, *, w, jl, jg, s, heads, dh, eps):
    wi = pl.program_id(1)
    f32 = jnp.float32

    # data-independent masks built in-kernel (no big HBM mask tensor)
    lrow = jax.lax.broadcasted_iota(jnp.int32, (w, jl), 0)
    lcol = jax.lax.broadcasted_iota(jnp.int32, (w, jl), 1)
    causal_m = lcol >= lrow + (jl - w + 1)                    # triu(j - i + 1)
    pad_m = jnp.logical_and(wi == 0, lcol < (jl - w))         # look_around pad rows
    keypad_m = lkeep_ref[0, 0] < 0.5                          # (1, jl), data-dependent
    local_mask = causal_m | pad_m | keypad_m                  # True = exclude

    g_qpos = wi * w + jax.lax.broadcasted_iota(jnp.int32, (w, jg), 0)
    g_col = jax.lax.broadcasted_iota(jnp.int32, (w, jg), 1)   # r == 1 -> col == segment
    global_mask = g_qpos < (g_col + 1) * s - 1                # ~(pos >= segment max)

    q_all = q_ref[0, 0]                                       # (w, heads*dh) bf16
    lkv_all = lkv_ref[0, 0].astype(f32)                       # (jl, heads*dh)
    gkv_all = gkv_ref[0].astype(f32)                          # (jg, heads*dh)
    lg, lb = lg_ref[...], lb_ref[...]
    gg, gb = gg_ref[...], gb_ref[...]

    def _ln(v, g, b):
        mu = jnp.mean(v, axis=-1, keepdims=True)
        var = jnp.mean(jnp.square(v - mu), axis=-1, keepdims=True)
        return (v - mu) * jax.lax.rsqrt(var + eps) * g + b

    outs = []
    for hh in range(heads):
        sl = slice(hh * dh, (hh + 1) * dh)
        qh = q_all[:, sl]                                     # (w, dh) bf16 (scaled, rotary)
        lh = _ln(lkv_all[:, sl], lg, lb).astype(jnp.bfloat16)  # local_norm fused
        gh = _ln(gkv_all[:, sl], gg, gb).astype(jnp.bfloat16)  # global_norm fused
        sim_g = jax.lax.dot_general(qh, gh, (((1,), (1,)), ((), ())),
                                    preferred_element_type=f32)        # (w, jg)
        sim_l = jax.lax.dot_general(qh, lh, (((1,), (1,)), ((), ())),
                                    preferred_element_type=f32)        # (w, jl)
        sim_g = jnp.where(global_mask, _MASK_VALUE, sim_g)
        sim_l = jnp.where(local_mask, _MASK_VALUE, sim_l)
        m = jnp.maximum(jnp.max(sim_g, axis=-1, keepdims=True),
                        jnp.max(sim_l, axis=-1, keepdims=True))
        pg = jnp.exp(sim_g - m)
        pll = jnp.exp(sim_l - m)
        inv = pl.reciprocal(jnp.sum(pg, axis=-1, keepdims=True) +
                            jnp.sum(pll, axis=-1, keepdims=True))
        oh = (jnp.dot((pg * inv).astype(jnp.bfloat16), gh,
                      preferred_element_type=f32) +
              jnp.dot((pll * inv).astype(jnp.bfloat16), lh,
                      preferred_element_type=f32))                      # (w, dh)
        outs.append(oh)
    o_ref[0, 0] = jnp.concatenate(outs, axis=-1).astype(o_ref.dtype)    # lane-dense


def attention_core(q, gkv, lkv, lkeep, local_g, local_b, glob_g, glob_b,
                   *, w, jl, jg, s, heads, dh):
    b, windows = q.shape[0], q.shape[1]
    inner = heads * dh
    kernel = functools.partial(_attn_kernel, w=w, jl=jl, jg=jg, s=s,
                               heads=heads, dh=dh, eps=1e-5)
    return pl.pallas_call(
        kernel,
        out_shape=jax.ShapeDtypeStruct((b, windows, w, inner), jnp.bfloat16),
        grid=(b, windows),
        in_specs=[
            pl.BlockSpec((1, 1, w, inner), lambda bi, wi: (bi, wi, 0, 0)),
            pl.BlockSpec((1, jg, inner), lambda bi, wi: (bi, 0, 0)),     # resident over windows
            pl.BlockSpec((1, 1, jl, inner), lambda bi, wi: (bi, wi, 0, 0)),
            pl.BlockSpec((1, 1, 1, jl), lambda bi, wi: (bi, wi, 0, 0)),
            pl.BlockSpec((1, dh), lambda bi, wi: (0, 0)),
            pl.BlockSpec((1, dh), lambda bi, wi: (0, 0)),
            pl.BlockSpec((1, dh), lambda bi, wi: (0, 0)),
            pl.BlockSpec((1, dh), lambda bi, wi: (0, 0)),
        ],
        out_specs=pl.BlockSpec((1, 1, w, inner), lambda bi, wi: (bi, wi, 0, 0)),
        compiler_params=pltpu.CompilerParams(
            dimension_semantics=("parallel", "arbitrary")),
    )(q, gkv, lkv, lkeep, local_g, local_b, glob_g, glob_b)


# ----------------------------------------------------------------------------
# LongShortAttention forward (causal branch, r == 1), matching the torch code
# ----------------------------------------------------------------------------
def long_short_attention(x, mask, p, cfg):
    b, n, dm = x.shape
    h, dh = cfg["heads"], cfg["dim_head"]
    w, s, r = cfg["window_size"], cfg["segment_size"], cfg["r"]
    assert cfg["causal"] and r == 1
    inner = h * dh
    scale = dh ** (-0.5)

    pad_mult = _lcm(w, s)
    P = _ceil_to(n, pad_mult)
    xp = x if P == n else jnp.pad(x, ((0, 0), (0, P - n), (0, 0)))
    windows = P // w
    if P != n:
        if mask is None:
            mask = jnp.ones((b, n), dtype=bool)
        mask = jnp.pad(mask, ((0, 0), (0, P - mask.shape[1])), constant_values=False)

    # --- projections (Pallas dense, bf16 MXU) ---
    xf = xp.reshape(b * P, dm)
    q = dense(xf, p["to_q_w"]).reshape(b, P, h, dh)
    kv = dense(xf, p["to_kv_w"]).reshape(b, P, h, dh)

    # --- rotary embedding (GPT-NeoX style, assumed impl) ---
    # TODO(synk): RotaryEmbedding not in provided source; standard impl assumed.
    pos = jnp.arange(P, dtype=jnp.float32)
    freqs = pos[:, None] * p["rot_inv_freq"][None, :]
    emb = jnp.concatenate([freqs, freqs], axis=-1)            # (P, dh)
    cos, sin = jnp.cos(emb)[None, :, None, :], jnp.sin(emb)[None, :, None, :]

    def rot_half(t):
        t1, t2 = t[..., : dh // 2], t[..., dh // 2:]
        return jnp.concatenate([-t2, t1], axis=-1)

    q = q * cos + rot_half(q) * sin
    kv = kv * cos + rot_half(kv) * sin
    q = q * scale

    # --- causal global path: dynamic projection (tiny, plain JAX) ---
    n_seg = P // s
    gseg = kv.reshape(b, n_seg, s, h, dh)
    pkv = jnp.einsum("bnshd,rd->bnshr", gseg, p["dyn_w"])
    if mask is not None:
        pmask = mask.reshape(b, n_seg, s)
        pkv = jnp.where(pmask[:, :, :, None, None], pkv, _MASK_VALUE)
    pkv = jax.nn.softmax(pkv, axis=2)
    gkv = jnp.einsum("bnshd,bnshr->bnrhd", gseg, pkv).reshape(b, n_seg * r, inner)
    jg = n_seg * r

    # --- local look-around KV (raw; LayerNorm fused into the kernel) ---
    kv_w = kv.reshape(b, windows, w, inner)
    kv_pad = jnp.pad(kv_w, ((0, 0), (1, 0), (0, 0), (0, 0)), constant_values=-1.0)
    lkv = jnp.concatenate([kv_pad[:, :windows], kv_pad[:, 1:windows + 1]], axis=2)
    jl = 2 * w

    # --- tiny data-dependent key-padding keep row (1.0 = keep, per torch) ---
    if mask is not None:
        mask_w = mask.reshape(b, windows, w)
        mask_pad = jnp.pad(mask_w, ((0, 0), (1, 0), (0, 0)), constant_values=False)
        lkeep = jnp.concatenate([mask_pad[:, :windows], mask_pad[:, 1:windows + 1]],
                                axis=2).astype(jnp.float32)
    else:
        lkeep = jnp.ones((b, windows, jl), jnp.float32)
    lkeep = lkeep.reshape(b, windows, 1, jl)

    # --- fused attention kernel (all heads per step, lane-dense output) ---
    out = attention_core(
        q.reshape(b, windows, w, inner).astype(jnp.bfloat16),
        gkv.astype(jnp.bfloat16),
        lkv.astype(jnp.bfloat16),
        lkeep,
        p["local_g"], p["local_b"], p["glob_g"], p["glob_b"],
        w=w, jl=jl, jg=jg, s=s, heads=h, dh=dh)
    out = out.reshape(b, P, inner)[:, :n]
    out = dense(out.reshape(b * n, inner), p["to_out_w"], p["to_out_b"])
    return out.reshape(b, n, dm)


# ----------------------------------------------------------------------------
# PositionwiseFeedForward (Conv1d -> GELU -> Conv1d), fused conv kernels
# ----------------------------------------------------------------------------
def positionwise_ff(x, p, kernel_size):
    h1 = conv1d_same(x, p["w1_w2d"], p["w1_b"], kernel_size[0],
                     activation="gelu", out_dtype=jnp.bfloat16)
    return conv1d_same(h1, p["w2_w2d"], p["w2_b"], kernel_size[1],
                       activation="none", out_dtype=jnp.float32)


# ----------------------------------------------------------------------------
# FFTBlock forward
# ----------------------------------------------------------------------------
def fft_block_forward(x, mask, params, cfg):
    dm = x.shape[-1]
    for layer in params["layers"]:
        xa = layernorm(x.reshape(-1, dm), layer["attn_norm_g"],
                       layer["attn_norm_b"]).reshape(x.shape)
        x = long_short_attention(xa, mask, layer["attn"], cfg) + x
        x = jnp.where(mask[..., None], 0.0, x)
        xf = layernorm(x.reshape(-1, dm), layer["ff_norm_g"],
                       layer["ff_norm_b"]).reshape(x.shape)
        x = positionwise_ff(xf, layer["ff"], cfg["kernel_size"]) + x
        x = jnp.where(mask[..., None], 0.0, x)
    return x


# ----------------------------------------------------------------------------
# Parameter init (torch layout) + one-time preparation (transpose/flatten/bf16)
# ----------------------------------------------------------------------------
def init_params(key, depth, d_model, n_head, d_head, d_inner, kernel_size, r):
    inner = n_head * d_head
    layers = []
    for _ in range(depth):
        key, *ks = jax.random.split(key, 9)
        layers.append({
            "attn_norm_g": jnp.ones((d_model,), jnp.float32),
            "attn_norm_b": jnp.zeros((d_model,), jnp.float32),
            "ff_norm_g": jnp.ones((d_model,), jnp.float32),
            "ff_norm_b": jnp.zeros((d_model,), jnp.float32),
            "attn": {
                "to_q_w": 0.02 * jax.random.normal(ks[0], (inner, d_model), jnp.float32),
                "to_kv_w": 0.02 * jax.random.normal(ks[1], (inner, d_model), jnp.float32),
                "to_out_w": 0.02 * jax.random.normal(ks[2], (d_model, inner), jnp.float32),
                "to_out_b": jnp.zeros((d_model,), jnp.float32),
                "dyn_w": 0.02 * jax.random.normal(ks[3], (r, d_head), jnp.float32),
                "local_g": jnp.ones((d_head,), jnp.float32),
                "local_b": jnp.zeros((d_head,), jnp.float32),
                "glob_g": jnp.ones((d_head,), jnp.float32),
                "glob_b": jnp.zeros((d_head,), jnp.float32),
                "rot_inv_freq": 1.0 / (10000.0 ** (
                    jnp.arange(0, d_head, 2, dtype=jnp.float32) / d_head)),
            },
            "ff": {
                "w1_w": 0.02 * jax.random.normal(ks[4], (d_inner, d_model, kernel_size[0]), jnp.float32),
                "w1_b": 0.02 * jax.random.normal(ks[5], (d_inner,), jnp.float32),
                "w2_w": 0.02 * jax.random.normal(ks[6], (d_model, d_inner, kernel_size[1]), jnp.float32),
                "w2_b": 0.02 * jax.random.normal(ks[7], (d_model,), jnp.float32),
            },
        })
    return {"layers": layers}


def prepare_params(params):
    """One-time weight prep: pre-transpose, flatten conv taps, cast to bf16."""
    prepped = {"layers": []}
    for layer in params["layers"]:
        a, f = layer["attn"], layer["ff"]
        d_inner = f["w1_w"].shape[0]
        d_model = f["w2_w"].shape[0]
        prepped["layers"].append({
            "attn_norm_g": layer["attn_norm_g"], "attn_norm_b": layer["attn_norm_b"],
            "ff_norm_g": layer["ff_norm_g"], "ff_norm_b": layer["ff_norm_b"],
            "attn": {
                "to_q_w": a["to_q_w"].T.astype(jnp.bfloat16),
                "to_kv_w": a["to_kv_w"].T.astype(jnp.bfloat16),
                "to_out_w": a["to_out_w"].T.astype(jnp.bfloat16),
                "to_out_b": a["to_out_b"].astype(jnp.float32),
                "dyn_w": a["dyn_w"].astype(jnp.float32),
                "local_g": a["local_g"].reshape(1, -1).astype(jnp.float32),
                "local_b": a["local_b"].reshape(1, -1).astype(jnp.float32),
                "glob_g": a["glob_g"].reshape(1, -1).astype(jnp.float32),
                "glob_b": a["glob_b"].reshape(1, -1).astype(jnp.float32),
                "rot_inv_freq": a["rot_inv_freq"].astype(jnp.float32),
            },
            "ff": {
                # (Cout, Cin, k) -> (k, Cin, Cout) -> (k*Cin, Cout), row = dk*Cin + ci
                "w1_w2d": jnp.transpose(f["w1_w"], (2, 1, 0)).reshape(-1, d_inner).astype(jnp.bfloat16),
                "w1_b": f["w1_b"].astype(jnp.float32),
                "w2_w2d": jnp.transpose(f["w2_w"], (2, 1, 0)).reshape(-1, d_model).astype(jnp.bfloat16),
                "w2_b": f["w2_b"].astype(jnp.float32),
            },
        })
    return prepped


if __name__ == "__main__":
    key = jax.random.PRNGKey(0)
    b, n = 2, 24
    depth, d_model, n_head, d_head, d_inner = 2, 32, 2, 16, 64
    kernel_size = (3, 3)
    segment_size, r = 16, 1
    cfg = dict(heads=n_head, dim_head=d_head, window_size=128,  # LongShortAttention defaults
               segment_size=segment_size, r=r, causal=True, kernel_size=kernel_size)

    k_x, k_p = jax.random.split(key)
    x = jax.random.normal(k_x, (b, n, d_model), dtype=jnp.float32)
    lengths = jnp.array([20, 16])
    mask = jnp.arange(n)[None, :] >= lengths[:, None]   # bool mask, as in FFTBlock.forward

    params = prepare_params(
        init_params(k_p, depth, d_model, n_head, d_head, d_inner, kernel_size, r))
    out = fft_block_forward(x, mask, params, cfg)
    out = jax.block_until_ready(out)
    assert out.shape == (b, n, d_model)
    assert bool(jnp.all(jnp.isfinite(out)))
    print("KERNEL_OK")
</pallas_src>

<mosaic_0001>
module attributes {stable_mosaic.version = 11 : i64} {
  func.func @_layernorm_kernel(%arg0: i32, %arg1: memref<48x32xf32, #tpu.memory_space<vmem>>, %arg2: memref<1x32xf32, #tpu.memory_space<vmem>>, %arg3: memref<1x32xf32, #tpu.memory_space<vmem>>, %arg4: memref<48x32xf32, #tpu.memory_space<vmem>>) attributes {dimension_semantics = [#tpu.dimension_semantics<parallel>], iteration_bounds = array<i64: 1>, scalar_prefetch = 0 : i64, scratch_operands = 0 : i64, tpu.core_type = #tpu.core_type<tc>, window_params = [{transform_indices = @transform_0, window_bounds = array<i64: 48, 32>}, {pipeline_mode = #tpu.pipeline_mode<synchronous>, transform_indices = @transform_1, window_bounds = array<i64: 1, 32>}, {pipeline_mode = #tpu.pipeline_mode<synchronous>, transform_indices = @transform_2, window_bounds = array<i64: 1, 32>}, {transform_indices = @transform_3, window_bounds = array<i64: 48, 32>}]} {
    %c0 = arith.constant 0 : index
    %c0_0 = arith.constant 0 : index
    %0 = vector.load %arg1[%c0, %c0_0] : memref<48x32xf32, #tpu.memory_space<vmem>>, vector<48x32xf32>
    %cst = arith.constant dense<0.000000e+00> : vector<48xf32>
    %1 = vector.multi_reduction <add>, %0, %cst [1] : vector<48x32xf32> to vector<48xf32>
    %2 = vector.shape_cast %1 : vector<48xf32> to vector<48x1xf32>
    %cst_1 = arith.constant 3.200000e+01 : f32
    %3 = vector.broadcast %cst_1 : f32 to vector<48x1xf32>
    %4 = arith.divf %2, %3 : vector<48x1xf32>
    %5 = vector.broadcast %4 : vector<48x1xf32> to vector<48x32xf32>
    %6 = arith.subf %0, %5 : vector<48x32xf32>
    %7 = arith.mulf %6, %6 : vector<48x32xf32>
    %cst_2 = arith.constant dense<0.000000e+00> : vector<48xf32>
    %8 = vector.multi_reduction <add>, %7, %cst_2 [1] : vector<48x32xf32> to vector<48xf32>
    %9 = vector.shape_cast %8 : vector<48xf32> to vector<48x1xf32>
    %cst_3 = arith.constant 3.200000e+01 : f32
    %10 = vector.broadcast %cst_3 : f32 to vector<48x1xf32>
    %11 = arith.divf %9, %10 : vector<48x1xf32>
    %12 = vector.broadcast %4 : vector<48x1xf32> to vector<48x32xf32>
    %13 = arith.subf %0, %12 : vector<48x32xf32>
    %cst_4 = arith.constant 9.99999974E-6 : f32
    %14 = vector.broadcast %cst_4 : f32 to vector<48x1xf32>
    %15 = arith.addf %11, %14 : vector<48x1xf32>
    %16 = math.rsqrt %15 : vector<48x1xf32>
    %17 = vector.broadcast %16 : vector<48x1xf32> to vector<48x32xf32>
    %18 = arith.mulf %13, %17 : vector<48x32xf32>
    %c0_5 = arith.constant 0 : index
    %c0_6 = arith.constant 0 : index
    %19 = vector.load %arg2[%c0_5, %c0_6] : memref<1x32xf32, #tpu.memory_space<vmem>>, vector<1x32xf32>
    %20 = vector.broadcast %19 : vector<1x32xf32> to vector<48x32xf32>
    %21 = arith.mulf %18, %20 : vector<48x32xf32>
    %c0_7 = arith.constant 0 : index
    %c0_8 = arith.constant 0 : index
    %22 = vector.load %arg3[%c0_7, %c0_8] : memref<1x32xf32, #tpu.memory_space<vmem>>, vector<1x32xf32>
    %23 = vector.broadcast %22 : vector<1x32xf32> to vector<48x32xf32>
    %24 = arith.addf %21, %23 : vector<48x32xf32>
    %c0_9 = arith.constant 0 : index
    %c0_10 = arith.constant 0 : index
    %25 = vector.load %arg4[%c0_9, %c0_10] : memref<48x32xf32, #tpu.memory_space<vmem>>, vector<48x32xf32>
    tpu.vector_store %arg4[%c0_9, %c0_10], %24 {strides = array<i32>} : memref<48x32xf32, #tpu.memory_space<vmem>>, vector<48x32xf32>,
    return
  }
  func.func @transform_0(%arg0: i32) -> (i32, i32) {
    %c0_i32 = arith.constant 0 : i32
    %c0_i32_0 = arith.constant 0 : i32
    return %arg0, %c0_i32 : i32, i32
  }
  func.func @transform_1(%arg0: i32) -> (i32, i32) {
    %c0_i32 = arith.constant 0 : i32
    %c0_i32_0 = arith.constant 0 : i32
    %c0_i32_1 = arith.constant 0 : i32
    return %c0_i32, %c0_i32_0 : i32, i32
  }
  func.func @transform_2(%arg0: i32) -> (i32, i32) {
    %c0_i32 = arith.constant 0 : i32
    %c0_i32_0 = arith.constant 0 : i32
    %c0_i32_1 = arith.constant 0 : i32
    return %c0_i32, %c0_i32_0 : i32, i32
  }
  func.func @transform_3(%arg0: i32) -> (i32, i32) {
    %c0_i32 = arith.constant 0 : i32
    %c0_i32_0 = arith.constant 0 : i32
    return %arg0, %c0_i32 : i32, i32
  }
}

</mosaic_0001>

<llo_original>
// kernel: tpu_custom_call.1
$region0: #{tpu_custom_call.1}
  #allocation0 [shape = 'u32[]', space=smem, size = 0x4, offset = 0x4, fixed_abs, tag = 'smem constant byte address 0x4 - core index']
  #allocation1 [shape = 'u32[144,128]{1,0:T(1,128)}', space=vmem, size = 0x12000, scoped, tag = 'internal scratch']
  %s0 = inlined_call_operand.vmem [shape: f32[48,32], index: 0, kind: input, shape index: {}]
  %s1 = inlined_call_operand.vmem [shape: f32[1,32], index: 1, kind: input, shape index: {}]
  %s2 = inlined_call_operand.vmem [shape: f32[1,32], index: 2, kind: input, shape index: {}]
  %s3 = inlined_call_operand.vmem [shape: f32[48,32], index: 3, kind: output, shape index: {}]
  %s4 = sld [smem:[#allocation0]]
  $region22: #{tpu_custom_call.1} parent=0
    _
  %s6 = ssub.s32 1, %s4
  %s7 = scalar_select 0, %s6, %s4
  // Predicated region
  $region2: #{tpu_custom_call.1} parent=0 // pred_check
    _
  $region3: #{tpu_custom_call.1} parent=0 // pred_check_branch
    %9 = sbr.rel (0) target = $region5
  $region4: #{tpu_custom_call.1} parent=0 // pred_region
    _
  $region5: #{tpu_custom_call.1} parent=0 // pred_fallthru
    _
  // Predicated region
  $region6: #{tpu_custom_call.1} parent=0 // pred_check
    _
  $region7: #{tpu_custom_call.1} parent=0 // pred_check_branch
    %11 = sbr.rel (0) target = $region9
  $region8: #{tpu_custom_call.1} parent=0 // pred_region
    _
  $region9: #{tpu_custom_call.1} parent=0 // pred_fallthru
    _
  // Predicated region
  $region10: #{tpu_custom_call.1} parent=0 // pred_check
    _
  $region11: #{tpu_custom_call.1} parent=0 // pred_check_branch
    %13 = sbr.rel (0) target = $region13
  $region12: #{tpu_custom_call.1} parent=0 // pred_region
    _
  $region13: #{tpu_custom_call.1} parent=0 // pred_fallthru
    _
  %v14 = vld [vmem:[%s0] sm:$0xff]
  %v15 = vld [vmem:[%s0 + $0x8] sm:$0xff]
  %v16 = vld [vmem:[%s0 + $0x10] sm:$0xff]
  %v17 = vld [vmem:[%s0 + $0x18] sm:$0xff]
  %v18 = vld [vmem:[%s0 + $0x20] sm:$0xff]
  %v19 = vld [vmem:[%s0 + $0x28] sm:$0xff]
  %vm20 = vcmask 261120
  %v21 = vsel %vm20, %v14, 0.0
  %22 = vadd.xlane.f32.xlu0 %v21
  %v23 = vpop.xlane.xlu0 %22
  %v24 = vsel %vm20, %v15, 0.0
  %25 = vadd.xlane.f32.xlu0 %v24
  %v26 = vpop.xlane.xlu0 %25
  %v27 = vsel %vm20, %v16, 0.0
  %28 = vadd.xlane.f32.xlu0 %v27
  %v29 = vpop.xlane.xlu0 %28
  %v30 = vsel %vm20, %v17, 0.0
  %31 = vadd.xlane.f32.xlu0 %v30
  %v32 = vpop.xlane.xlu0 %31
  %v33 = vsel %vm20, %v18, 0.0
  %34 = vadd.xlane.f32.xlu0 %v33
  %v35 = vpop.xlane.xlu0 %34
  %v36 = vsel %vm20, %v19, 0.0
  %37 = vadd.xlane.f32.xlu0 %v36
  %v38 = vpop.xlane.xlu0 %37
  %v39 = vrcp.pop 32.0
  %v40 = vmul.f32 %v23, %v39
  %v41 = vmul.f32 %v26, %v39
  %v42 = vmul.f32 %v29, %v39
  %v43 = vmul.f32 %v32, %v39
  %v44 = vmul.f32 %v35, %v39
  %v45 = vmul.f32 %v38, %v39
  %v46 = vsub.f32 %v14, %v40
  %v47 = vsub.f32 %v15, %v41
  %v48 = vsub.f32 %v16, %v42
  %v49 = vsub.f32 %v17, %v43
  %v50 = vsub.f32 %v18, %v44
  %v51 = vsub.f32 %v19, %v45
  %v52 = vmul.f32 %v46, %v46
  %v53 = vmul.f32 %v47, %v47
  %v54 = vmul.f32 %v48, %v48
  %v55 = vmul.f32 %v49, %v49
  %v56 = vmul.f32 %v50, %v50
  %v57 = vmul.f32 %v51, %v51
  %v58 = vsel %vm20, %v52, 0.0
  %59 = vadd.xlane.f32.xlu0 %v58
  %v60 = vpop.xlane.xlu0 %59
  %v61 = vsel %vm20, %v53, 0.0
  %62 = vadd.xlane.f32.xlu0 %v61
  %v63 = vpop.xlane.xlu0 %62
  %v64 = vsel %vm20, %v54, 0.0
  %65 = vadd.xlane.f32.xlu0 %v64
  %v66 = vpop.xlane.xlu0 %65
  %v67 = vsel %vm20, %v55, 0.0
  %68 = vadd.xlane.f32.xlu0 %v67
  %v69 = vpop.xlane.xlu0 %68
  %v70 = vsel %vm20, %v56, 0.0
  %71 = vadd.xlane.f32.xlu0 %v70
  %v72 = vpop.xlane.xlu0 %71
  %v73 = vsel %vm20, %v57, 0.0
  %74 = vadd.xlane.f32.xlu0 %v73
  %v75 = vpop.xlane.xlu0 %74
  %v76 = vmul.f32 %v60, %v39
  %v77 = vmul.f32 %v63, %v39
  %v78 = vmul.f32 %v66, %v39
  %v79 = vmul.f32 %v69, %v39
  %v80 = vmul.f32 %v72, %v39
  %v81 = vmul.f32 %v75, %v39
  %v82 = vadd.f32 %v76, 1e-05
  %v83 = vadd.f32 %v77, 1e-05
  %v84 = vadd.f32 %v78, 1e-05
  %v85 = vadd.f32 %v79, 1e-05
  %v86 = vadd.f32 %v80, 1e-05
  %v87 = vadd.f32 %v81, 1e-05
  %v88 = vrsqrt.pop %v82
  %v89 = vrsqrt.pop %v83
  %v90 = vrsqrt.pop %v84
  %v91 = vrsqrt.pop %v85
  %v92 = vrsqrt.pop %v86
  %v93 = vrsqrt.pop %v87
  %v94 = vmul.f32 %v46, %v88
  %v95 = vmul.f32 %v47, %v89
  %v96 = vmul.f32 %v48, %v90
  %v97 = vmul.f32 %v49, %v91
  %v98 = vmul.f32 %v50, %v92
  %v99 = vmul.f32 %v51, %v93
  %v100 = vld [vmem:[%s1] sm:$0x1]
  %v102 = vlaneseq
  %v103 = vshrl.u32 %v102, 7
  %v104 = vsub.s32 0, %v103
  %v105 = vrot.slane %v100, %v104
  %v107 = vmul.f32 %v94, %v105
  %v108 = vmul.f32 %v95, %v105
  %v109 = vmul.f32 %v96, %v105
  %v110 = vmul.f32 %v97, %v105
  %v111 = vmul.f32 %v98, %v105
  %v112 = vmul.f32 %v99, %v105
  %v113 = vld [vmem:[%s2] sm:$0x1]
  %v115 = vlaneseq
  %v116 = vshrl.u32 %v115, 7
  %v117 = vsub.s32 0, %v116
  %v118 = vrot.slane %v113, %v117
  %v120 = vadd.f32 %v107, %v118
  %v121 = vadd.f32 %v108, %v118
  %v122 = vadd.f32 %v109, %v118
  %v123 = vadd.f32 %v110, %v118
  %v124 = vadd.f32 %v111, %v118
  %v125 = vadd.f32 %v112, %v118
  %126 = vst.msk [vmem:[%s3] sm:$0xff] %vm20, %v120
  %127 = vst.msk [vmem:[%s3 + $0x8] sm:$0xff] %vm20, %v121
  %128 = vst.msk [vmem:[%s3 + $0x10] sm:$0xff] %vm20, %v122
  %129 = vst.msk [vmem:[%s3 + $0x18] sm:$0xff] %vm20, %v123
  %130 = vst.msk [vmem:[%s3 + $0x20] sm:$0xff] %vm20, %v124
  %131 = vst.msk [vmem:[%s3 + $0x28] sm:$0xff] %vm20, %v125
  // Predicated region
  $region14: #{tpu_custom_call.1} parent=0 // pred_check
    _
  $region15: #{tpu_custom_call.1} parent=0 // pred_check_branch
    %133 = sbr.rel (0) target = $region17
  $region16: #{tpu_custom_call.1} parent=0 // pred_region
    _
  $region17: #{tpu_custom_call.1} parent=0 // pred_fallthru
    _
  // Predicated region
  $region18: #{tpu_custom_call.1} parent=0 // pred_check
    _
  $region19: #{tpu_custom_call.1} parent=0 // pred_check_branch
    %135 = sbr.rel (0) target = $region21
  $region20: #{tpu_custom_call.1} parent=0 // pred_region
    _
  $region21: #{tpu_custom_call.1} parent=0 // pred_fallthru
    _

</llo_original>
